<compile_context>
chip_gen: v5e
topology: v5e:2x2
jax: 0.10.0
libtpu: 0.0.40
codegen_flags: <defaults>
</compile_context>

<pallas_src>
import jax
import jax.numpy as jnp
from jax.experimental import pallas as pl
from jax.experimental.pallas import tpu as pltpu


def ffn_kernel(x_ref, w1_ref, b1_ref, w2_ref, b2_ref, o_ref, acc_ref):
    # x_ref:  (tm, dim)      w1_ref: (dim, tk)   b1_ref: (1, tk)
    # w2_ref: (tk, dim)      b2_ref: (1, dim)    o_ref:  (tm, dim)
    # acc_ref: (tm, dim) f32 accumulator, resident across the hidden (k) axis.
    k = pl.program_id(1)

    @pl.when(k == 0)
    def _init():
        # Fold the second bias into the accumulator init: applied exactly once.
        acc_ref[...] = jnp.broadcast_to(b2_ref[...], acc_ref.shape)

    # First matmul on the hidden slice k (operands may be bf16; accumulate f32).
    h = jnp.dot(x_ref[...], w1_ref[...], preferred_element_type=jnp.float32)
    h = h + b1_ref[...]                 # bias for this hidden slice (f32)
    h = jnp.maximum(h, 0.0)             # ReLU (elementwise -> safe under hidden tiling)
    # TODO(synk): dropout(p=0.0) is identity; nonzero-p training dropout would use
    # pltpu.prng_seed / pltpu.prng_random_bits here.

    # Partial second matmul: accumulate this hidden slice's contribution.
    acc_ref[...] += jnp.dot(h.astype(w2_ref.dtype), w2_ref[...],
                            preferred_element_type=jnp.float32)

    @pl.when(k == pl.num_programs(1) - 1)
    def _finalize():
        o_ref[...] = acc_ref[...].astype(o_ref.dtype)


def _pick_tile(total, target, align):
    """Largest multiple of `align` <= target that divides `total`; else full extent."""
    if total <= target:
        return total
    t = (target // align) * align
    while t >= align:
        if total % t == 0:
            return t
        t -= align
    return total


def feed_forward(x, w1, b1, w2, b2, *, tm=256, tk=512, matmul_dtype=None):
    """x: [B, S, dim]; w1: [dim, hidden]; b1: [hidden]; w2: [hidden, dim]; b2: [dim].

    matmul_dtype: optional cast for matmul operands (e.g. jnp.bfloat16) — f32
    accumulation, f32 bias/ReLU, output in x.dtype.
    """
    B, S, dim = x.shape
    hidden = w1.shape[1]
    M = B * S
    out_dtype = x.dtype

    tm = _pick_tile(M, tm, 8)        # row tile (sublane-aligned)
    tk = _pick_tile(hidden, tk, 128) # hidden/reduction tile (lane-aligned)

    x2d = x.reshape(M, dim)
    if matmul_dtype is not None:
        x2d = x2d.astype(matmul_dtype)
        w1 = w1.astype(matmul_dtype)
        w2 = w2.astype(matmul_dtype)
    b1_2d = b1.reshape(1, hidden).astype(jnp.float32)
    b2_2d = b2.reshape(1, dim).astype(jnp.float32)

    # Explicit VMEM budget: double-buffered tiles + f32 accumulator, with headroom.
    xb, wb, ob = x2d.dtype.itemsize, w1.dtype.itemsize, jnp.dtype(out_dtype).itemsize
    est = 2 * (tm * dim * xb + dim * tk * wb + tk * dim * wb
               + 4 * (tk + dim) + tm * dim * ob) + tm * dim * 4
    vmem_limit = min(max(int(1.5 * est), 32 * 1024 * 1024), 64 * 1024 * 1024)

    out2d = pl.pallas_call(
        ffn_kernel,
        out_shape=jax.ShapeDtypeStruct((M, dim), out_dtype),
        grid_spec=pltpu.PrefetchScalarGridSpec(
            num_scalar_prefetch=0,
            grid=(M // tm, hidden // tk),
            in_specs=[
                pl.BlockSpec((tm, dim), lambda i, k: (i, 0)),   # x row tile
                pl.BlockSpec((dim, tk), lambda i, k: (0, k)),   # W1 hidden slice
                pl.BlockSpec((1, tk),   lambda i, k: (0, k)),   # b1 hidden slice
                pl.BlockSpec((tk, dim), lambda i, k: (k, 0)),   # W2 hidden slice
                pl.BlockSpec((1, dim),  lambda i, k: (0, 0)),   # b2
            ],
            out_specs=pl.BlockSpec((tm, dim), lambda i, k: (i, 0)),
            scratch_shapes=[pltpu.VMEM((tm, dim), jnp.float32)],
        ),
        compiler_params=pltpu.CompilerParams(
            dimension_semantics=("parallel", "arbitrary"),
            vmem_limit_bytes=vmem_limit,
        ),
    )(x2d, w1, b1_2d, w2, b2_2d)

    return out2d.reshape(B, S, dim)


def init_params(key, dim, hidden_dim, dtype=jnp.float32):
    """Deterministic init mirroring nn.Linear's U(-1/sqrt(fan_in), 1/sqrt(fan_in)).
    PyTorch stores weight as (out, in); we keep the (in, out) transpose for x @ W."""
    k1, k2, k3, k4 = jax.random.split(key, 4)
    bound1 = 1.0 / (dim ** 0.5)
    bound2 = 1.0 / (hidden_dim ** 0.5)
    w1 = jax.random.uniform(k1, (dim, hidden_dim), dtype, -bound1, bound1)
    b1 = jax.random.uniform(k2, (hidden_dim,), dtype, -bound1, bound1)
    w2 = jax.random.uniform(k3, (hidden_dim, dim), dtype, -bound2, bound2)
    b2 = jax.random.uniform(k4, (dim,), dtype, -bound2, bound2)
    return w1, b1, w2, b2


if __name__ == "__main__":
    key = jax.random.PRNGKey(0)
    kx, kp = jax.random.split(key)

    # Small but lane-dense shapes: dim multiple of 128; hidden tiled into 2 k-steps
    # below to exercise the reduction-axis accumulator path.
    B, S, dim, hidden_dim = 2, 16, 128, 256
    x = jax.random.normal(kx, (B, S, dim), jnp.float32)
    w1, b1, w2, b2 = init_params(kp, dim, hidden_dim)

    ref = jnp.maximum(x @ w1 + b1, 0.0) @ w2 + b2

    # f32 path with a multi-step hidden reduction (tk=128 -> 2 grid steps on axis 1).
    out = feed_forward(x, w1, b1, w2, b2, tm=32, tk=128)
    out = jax.block_until_ready(out)
    assert out.shape == (B, S, dim)
    assert jnp.allclose(out, ref, atol=1e-5, rtol=1e-5)

    # bf16 matmul operands (production fast path), f32 accumulation -> looser tol.
    out_bf16 = feed_forward(x, w1, b1, w2, b2, tm=32, tk=128,
                            matmul_dtype=jnp.bfloat16)
    out_bf16 = jax.block_until_ready(out_bf16)
    assert out_bf16.shape == (B, S, dim)
    assert float(jnp.max(jnp.abs(out_bf16 - ref))) < 1e-1

    print("KERNEL_OK")
</pallas_src>

<mosaic_0001>
module attributes {stable_mosaic.version = 11 : i64} {
  func.func @ffn_kernel(%arg0: i32, %arg1: i32, %arg2: memref<32x128xf32, #tpu.memory_space<vmem>>, %arg3: memref<128x128xf32, #tpu.memory_space<vmem>>, %arg4: memref<1x128xf32, #tpu.memory_space<vmem>>, %arg5: memref<128x128xf32, #tpu.memory_space<vmem>>, %arg6: memref<1x128xf32, #tpu.memory_space<vmem>>, %arg7: memref<32x128xf32, #tpu.memory_space<vmem>>, %arg8: memref<32x128xf32, #tpu.memory_space<vmem>>) attributes {dimension_semantics = [#tpu.dimension_semantics<parallel>, #tpu.dimension_semantics<arbitrary>], iteration_bounds = array<i64: 1, 2>, scalar_prefetch = 0 : i64, scratch_operands = 1 : i64, tpu.core_type = #tpu.core_type<tc>, window_params = [{transform_indices = @transform_0, window_bounds = array<i64: 32, 128>}, {transform_indices = @transform_1, window_bounds = array<i64: 128, 128>}, {transform_indices = @transform_2, window_bounds = array<i64: 1, 128>}, {transform_indices = @transform_3, window_bounds = array<i64: 128, 128>}, {pipeline_mode = #tpu.pipeline_mode<synchronous>, transform_indices = @transform_4, window_bounds = array<i64: 1, 128>}, {transform_indices = @transform_5, window_bounds = array<i64: 32, 128>}]} {
    %c0_i32 = arith.constant 0 : i32
    %0 = arith.cmpi eq, %arg1, %c0_i32 : i32
    %1 = arith.extui %0 : i1 to i32
    %c0_i32_0 = arith.constant 0 : i32
    %2 = arith.cmpi ne, %1, %c0_i32_0 : i32
    scf.if %2 {
      %c0_15 = arith.constant 0 : index
      %c0_16 = arith.constant 0 : index
      %19 = vector.load %arg6[%c0_15, %c0_16] : memref<1x128xf32, #tpu.memory_space<vmem>>, vector<1x128xf32>
      %20 = vector.shape_cast %19 : vector<1x128xf32> to vector<1x128xf32>
      %21 = vector.broadcast %20 : vector<1x128xf32> to vector<32x128xf32>
      %c0_17 = arith.constant 0 : index
      %c0_18 = arith.constant 0 : index
      %22 = vector.load %arg8[%c0_17, %c0_18] : memref<32x128xf32, #tpu.memory_space<vmem>>, vector<32x128xf32>
      tpu.vector_store %arg8[%c0_17, %c0_18], %21 {strides = array<i32>} : memref<32x128xf32, #tpu.memory_space<vmem>>, vector<32x128xf32>,
    } else {
    }
    %c0 = arith.constant 0 : index
    %c0_1 = arith.constant 0 : index
    %3 = vector.load %arg2[%c0, %c0_1] : memref<32x128xf32, #tpu.memory_space<vmem>>, vector<32x128xf32>
    %c0_2 = arith.constant 0 : index
    %c0_3 = arith.constant 0 : index
    %4 = vector.load %arg3[%c0_2, %c0_3] : memref<128x128xf32, #tpu.memory_space<vmem>>, vector<128x128xf32>
    %cst = arith.constant dense<0.000000e+00> : vector<32x128xf32>
    %5 = tpu.matmul %3, %4, %cst {dimension_numbers = #tpu.dot_dimension_numbers<[1], [0], [0], [1], [0, 0, 1, 1], [], []>} : vector<32x128xf32>, vector<128x128xf32>, vector<32x128xf32> -> vector<32x128xf32>
    %c0_4 = arith.constant 0 : index
    %c0_5 = arith.constant 0 : index
    %6 = vector.load %arg4[%c0_4, %c0_5] : memref<1x128xf32, #tpu.memory_space<vmem>>, vector<1x128xf32>
    %7 = vector.broadcast %6 : vector<1x128xf32> to vector<32x128xf32>
    %8 = arith.addf %5, %7 : vector<32x128xf32>
    %cst_6 = arith.constant 0.000000e+00 : f32
    %9 = vector.broadcast %cst_6 : f32 to vector<32x128xf32>
    %10 = arith.maximumf %8, %9 : vector<32x128xf32>
    %c0_7 = arith.constant 0 : index
    %c0_8 = arith.constant 0 : index
    %11 = vector.load %arg8[%c0_7, %c0_8] : memref<32x128xf32, #tpu.memory_space<vmem>>, vector<32x128xf32>
    %c0_9 = arith.constant 0 : index
    %c0_10 = arith.constant 0 : index
    %12 = vector.load %arg5[%c0_9, %c0_10] : memref<128x128xf32, #tpu.memory_space<vmem>>, vector<128x128xf32>
    %cst_11 = arith.constant dense<0.000000e+00> : vector<32x128xf32>
    %13 = tpu.matmul %10, %12, %cst_11 {dimension_numbers = #tpu.dot_dimension_numbers<[1], [0], [0], [1], [0, 0, 1, 1], [], []>} : vector<32x128xf32>, vector<128x128xf32>, vector<32x128xf32> -> vector<32x128xf32>
    %14 = arith.addf %11, %13 : vector<32x128xf32>
    %c0_12 = arith.constant 0 : index
    %c0_13 = arith.constant 0 : index
    %15 = vector.load %arg8[%c0_12, %c0_13] : memref<32x128xf32, #tpu.memory_space<vmem>>, vector<32x128xf32>
    tpu.vector_store %arg8[%c0_12, %c0_13], %14 {strides = array<i32>} : memref<32x128xf32, #tpu.memory_space<vmem>>, vector<32x128xf32>,
    %c1_i32 = arith.constant 1 : i32
    %16 = arith.cmpi eq, %arg1, %c1_i32 : i32
    %17 = arith.extui %16 : i1 to i32
    %c0_i32_14 = arith.constant 0 : i32
    %18 = arith.cmpi ne, %17, %c0_i32_14 : i32
    scf.if %18 {
      %c0_15 = arith.constant 0 : index
      %c0_16 = arith.constant 0 : index
      %19 = vector.load %arg8[%c0_15, %c0_16] : memref<32x128xf32, #tpu.memory_space<vmem>>, vector<32x128xf32>
      %c0_17 = arith.constant 0 : index
      %c0_18 = arith.constant 0 : index
      %20 = vector.load %arg7[%c0_17, %c0_18] : memref<32x128xf32, #tpu.memory_space<vmem>>, vector<32x128xf32>
      tpu.vector_store %arg7[%c0_17, %c0_18], %19 {strides = array<i32>} : memref<32x128xf32, #tpu.memory_space<vmem>>, vector<32x128xf32>,
    } else {
    }
    return
  }
  func.func @transform_0(%arg0: i32, %arg1: i32) -> (i32, i32) {
    %c0_i32 = arith.constant 0 : i32
    %c0_i32_0 = arith.constant 0 : i32
    return %arg0, %c0_i32 : i32, i32
  }
  func.func @transform_1(%arg0: i32, %arg1: i32) -> (i32, i32) {
    %c0_i32 = arith.constant 0 : i32
    %c0_i32_0 = arith.constant 0 : i32
    return %c0_i32, %arg1 : i32, i32
  }
  func.func @transform_2(%arg0: i32, %arg1: i32) -> (i32, i32) {
    %c0_i32 = arith.constant 0 : i32
    %c0_i32_0 = arith.constant 0 : i32
    return %c0_i32, %arg1 : i32, i32
  }
  func.func @transform_3(%arg0: i32, %arg1: i32) -> (i32, i32) {
    %c0_i32 = arith.constant 0 : i32
    %c0_i32_0 = arith.constant 0 : i32
    return %arg1, %c0_i32 : i32, i32
  }
  func.func @transform_4(%arg0: i32, %arg1: i32) -> (i32, i32) {
    %c0_i32 = arith.constant 0 : i32
    %c0_i32_0 = arith.constant 0 : i32
    %c0_i32_1 = arith.constant 0 : i32
    return %c0_i32, %c0_i32_0 : i32, i32
  }
  func.func @transform_5(%arg0: i32, %arg1: i32) -> (i32, i32) {
    %c0_i32 = arith.constant 0 : i32
    %c0_i32_0 = arith.constant 0 : i32
    return %arg0, %c0_i32 : i32, i32
  }
}

</mosaic_0001>

<llo_original>
// kernel: tpu_custom_call.1
$region0: #{tpu_custom_call.1}
  #allocation0 [shape = 'u32[]', space=smem, size = 0x4, offset = 0x4, fixed_abs, tag = 'smem constant byte address 0x4 - core index']
  #allocation1 [shape = 'u32[72,128]{1,0:T(1,128)}', space=vmem, size = 0x9000, scoped, tag = 'internal scratch']
  #allocation2 [shape = 'f32[32,128]{1,0:T(8,128)}', space=vmem, size = 0x4000, scoped, tag = 'scratch operand']
  %s0 = inlined_call_operand.hbm [shape: f32[32,128], index: 0, kind: input, shape index: {}]
  %s1 = inlined_call_operand.hbm [shape: f32[128,256], index: 1, kind: input, shape index: {}]
  %s2 = inlined_call_operand.hbm [shape: f32[1,256], index: 2, kind: input, shape index: {}]
  %s3 = inlined_call_operand.hbm [shape: f32[256,128], index: 3, kind: input, shape index: {}]
  %s4 = inlined_call_operand.vmem [shape: f32[1,128], index: 4, kind: input, shape index: {}]
  %s5 = inlined_call_operand.hbm [shape: f32[32,128], index: 5, kind: output, shape index: {}]
  %s6 = sld [smem:[#allocation0]]
  $region77: #{tpu_custom_call.1} parent=0
    _
  %s8 = ssub.s32 1, %s6
  %s9 = scalar_select 0, %s8, %s6
  $region1: #{tpu_custom_call.1} parent=0
    #allocation3 [shape = 'u8[16384]{0}', space=vmem, size = 0x4000, scoped, tag = 'input window, operand 0, single buffered']
    #allocation4 [shape = 's32[2]{0}', space=sflag, size = 0x8, scoped, tag = 'scoped memory for tpu_custom_call.1']
    #allocation5 [shape = 's32[2]{0}', space=sflag, size = 0x8, scoped, tag = 'scoped memory for tpu_custom_call.1']
    #allocation6 [shape = 'u8[131072]{0}', space=vmem, size = 0x20000, scoped, tag = 'input window, operand 1']
    #allocation7 [shape = 's32[2]{0}', space=sflag, size = 0x8, scoped, tag = 'scoped memory for tpu_custom_call.1']
    #allocation8 [shape = 'u8[1024]{0}', space=vmem, size = 0x400, scoped, tag = 'input window, operand 2']
    #allocation9 [shape = 'u8[131072]{0}', space=vmem, size = 0x20000, scoped, tag = 'input window, operand 3']
    #allocation10 [shape = 's32[2]{0}', space=sflag, size = 0x8, scoped, tag = 'scoped memory for tpu_custom_call.1']
    #allocation11 [shape = 'u8[16384]{0}', space=vmem, size = 0x4000, scoped, tag = 'output window, operand 0, single buffered']
    %10 = vsyncpa [#allocation4], 0
    %11 = vsyncpa [#allocation7], 0
    %s12 = scalar_lea.sflag [#allocation7], 1
    %13 = vsyncpa %s12, 0
    %14 = vsyncpa [#allocation10], 0
    %s15 = scalar_lea.sflag [#allocation10], 1
    %16 = vsyncpa %s15, 0
    %17 = vsyncpa [#allocation5], 0
    loop: start=0, step=1, limit=4
    $region2: #{tpu_custom_call.1} parent=1 // loop_pre_header
      _
    $region3: #{tpu_custom_call.1} parent=1 // loop_header
      %s19 = sphi 0, %s23
      %p20 = scmp.ge.s32.totalorder %s19, 4
      %s26 = sphi 0, %s38
      %s27 = sphi 0, %s34
      %s28 = sphi 0, %s26
      %s29 = sphi 0, %s27
      %s30 = sphi 0, %s28
      %s31 = sphi 0, %s29
      %s41 = sphi 0, %s43
      %s44 = sphi 0, %s41
      %s45 = sphi 0, %s44
      %s61 = sphi 0, %s45
      %s67 = sphi 0, %s69
      %s70 = sphi 0, %s67
      %s71 = sphi 0, %s70
      %s87 = sphi 0, %s71
      %s93 = sphi 0, %s95
      %s96 = sphi 0, %s93
      %s97 = sphi 0, %s96
      %s113 = sphi 0, %s97
      %s119 = sphi 0, %s121
      %s122 = sphi 0, %s119
      %s123 = sphi 0, %s122
      %s139 = sphi 0, %s123
      %s143 = sphi 0, %s143
      %s145 = sphi 0, %s143
      %s146 = sphi 0, %s145
      %s160 = sphi 0, %s146
      %s166 = sphi 0, %s168
      %s169 = sphi 0, %s166
      %s170 = sphi 0, %s169
      %s186 = sphi 0, %s170
    $region4: #{tpu_custom_call.1} parent=1 // loop_header_branch
      %22 = sbr.rel (%p20) target = $region8
    $region5: #{tpu_custom_call.1} parent=1 // loop_body
      %s24 = ssub.s32 %s19, 1
      %s25 = ssub.s32 %s19, 2
      %s32 = sadd.s32 1, %s27
      %p33 = scmp.ge.s32.totalorder %s32, 2
      %s34 = scalar_select %p33, 0, %s32
      %s35 = sadd.s32 1, %s26
      %s36 = scalar_select %p33, %s35, %s26
      %p37 = scmp.ge.s32.totalorder %s36, 1
      %s38 = scalar_select %p37, 0, %s36
      %s39 = ssub.s32 %s26, %s38
      %p40 = scmp.eq.s32.totalorder %s39, 0
      %s42 = sadd.s32 %s41, 1
      %s43 = scalar_select %p40, %s41, %s42
      %p46 = pneg %p40
      %p47 = scmp.eq.s32.totalorder %s19, 1
      %p48 = por %p46, %p47
      %p49 = scmp.ne.s32.totalorder %s41, %s44
      %p50 = scmp.eq.s32.totalorder %s19, 0
      %p51 = por %p49, %p50
      %p52 = scmp.ne.s32.totalorder %s41, %s44
      %p53 = scmp.eq.s32.totalorder %s24, 1
      %p54 = por %p52, %p53
      %p55 = scmp.ne.s32.totalorder %s44, %s45
      %p56 = scmp.eq.s32.totalorder %s24, 0
      %p57 = por %p55, %p56
      %p58 = scmp.ne.s32.totalorder %s44, %s45
      %p59 = scmp.eq.s32.totalorder %s25, 1
      %p60 = por %p58, %p59
      %p62 = scmp.ne.s32.totalorder %s45, %s61
      %p63 = scmp.eq.s32.totalorder %s25, 0
      %p64 = por %p62, %p63
      %s65 = ssub.s32 %s27, %s34
      %p66 = scmp.eq.s32.totalorder %s65, 0
      %s68 = sadd.s32 %s67, 1
      %s69 = scalar_select %p66, %s67, %s68
      %p72 = pneg %p66
      %p73 = scmp.eq.s32.totalorder %s19, 1
      %p74 = por %p72, %p73
      %p75 = scmp.ne.s32.totalorder %s67, %s70
      %p76 = scmp.eq.s32.totalorder %s19, 0
      %p77 = por %p75, %p76
      %p78 = scmp.ne.s32.totalorder %s67, %s70
      %p79 = scmp.eq.s32.totalorder %s24, 1
      %p80 = por %p78, %p79
      %p81 = scmp.ne.s32.totalorder %s70, %s71
      %p82 = scmp.eq.s32.totalorder %s24, 0
      %p83 = por %p81, %p82
      %p84 = scmp.ne.s32.totalorder %s70, %s71
      %p85 = scmp.eq.s32.totalorder %s25, 1
      %p86 = por %p84, %p85
      %p88 = scmp.ne.s32.totalorder %s71, %s87
      %p89 = scmp.eq.s32.totalorder %s25, 0
      %p90 = por %p88, %p89
      %s91 = ssub.s32 %s27, %s34
      %p92 = scmp.eq.s32.totalorder %s91, 0
      %s94 = sadd.s32 %s93, 1
      %s95 = scalar_select %p92, %s93, %s94
      %p98 = pneg %p92
      %p99 = scmp.eq.s32.totalorder %s19, 1
      %p100 = por %p98, %p99
      %p101 = scmp.ne.s32.totalorder %s93, %s96
      %p102 = scmp.eq.s32.totalorder %s19, 0
      %p103 = por %p101, %p102
      %p104 = scmp.ne.s32.totalorder %s93, %s96
      %p105 = scmp.eq.s32.totalorder %s24, 1
      %p106 = por %p104, %p105
      %p107 = scmp.ne.s32.totalorder %s96, %s97
      %p108 = scmp.eq.s32.totalorder %s24, 0
      %p109 = por %p107, %p108
      %p110 = scmp.ne.s32.totalorder %s96, %s97
      %p111 = scmp.eq.s32.totalorder %s25, 1
      %p112 = por %p110, %p111
      %p114 = scmp.ne.s32.totalorder %s97, %s113
      %p115 = scmp.eq.s32.totalorder %s25, 0
      %p116 = por %p114, %p115
      %s117 = ssub.s32 %s27, %s34
      %p118 = scmp.eq.s32.totalorder %s117, 0
      %s120 = sadd.s32 %s119, 1
      %s121 = scalar_select %p118, %s119, %s120
      %p124 = pneg %p118
      %p125 = scmp.eq.s32.totalorder %s19, 1
      %p126 = por %p124, %p125
      %p127 = scmp.ne.s32.totalorder %s119, %s122
      %p128 = scmp.eq.s32.totalorder %s19, 0
      %p129 = por %p127, %p128
      %p130 = scmp.ne.s32.totalorder %s119, %s122
      %p131 = scmp.eq.s32.totalorder %s24, 1
      %p132 = por %p130, %p131
      %p133 = scmp.ne.s32.totalorder %s122, %s123
      %p134 = scmp.eq.s32.totalorder %s24, 0
      %p135 = por %p133, %p134
      %p136 = scmp.ne.s32.totalorder %s122, %s123
      %p137 = scmp.eq.s32.totalorder %s25, 1
      %p138 = por %p136, %p137
      %p140 = scmp.ne.s32.totalorder %s123, %s139
      %p141 = scmp.eq.s32.totalorder %s25, 0
      %p142 = por %p140, %p141
      %s144 = sadd.s32 %s143, 1
      %p147 = scmp.eq.s32.totalorder %s19, 1
      %p148 = scmp.ne.s32.totalorder %s143, %s145
      %p149 = scmp.eq.s32.totalorder %s19, 0
      %p150 = por %p148, %p149
      %p151 = scmp.ne.s32.totalorder %s143, %s145
      %p152 = scmp.eq.s32.totalorder %s24, 1
      %p153 = por %p151, %p152
      %p154 = scmp.ne.s32.totalorder %s145, %s146
      %p155 = scmp.eq.s32.totalorder %s24, 0
      %p156 = por %p154, %p155
      %p157 = scmp.ne.s32.totalorder %s145, %s146
      %p158 = scmp.eq.s32.totalorder %s25, 1
      %p159 = por %p157, %p158
      %p161 = scmp.ne.s32.totalorder %s146, %s160
      %p162 = scmp.eq.s32.totalorder %s25, 0
      %p163 = por %p161, %p162
      %s164 = ssub.s32 %s26, %s38
      %p165 = scmp.eq.s32.totalorder %s164, 0
      %s167 = sadd.s32 %s166, 1
      %s168 = scalar_select %p165, %s166, %s167
      %p171 = pneg %p165
      %p172 = scmp.eq.s32.totalorder %s19, 1
      %p173 = por %p171, %p172
      %p174 = scmp.ne.s32.totalorder %s166, %s169
      %p175 = scmp.eq.s32.totalorder %s19, 0
      %p176 = por %p174, %p175
      %p177 = scmp.ne.s32.totalorder %s166, %s169
      %p178 = scmp.eq.s32.totalorder %s24, 1
      %p179 = por %p177, %p178
      %p180 = scmp.ne.s32.totalorder %s169, %s170
      %p181 = scmp.eq.s32.totalorder %s24, 0
      %p182 = por %p180, %p181
      %p183 = scmp.ne.s32.totalorder %s169, %s170
      %p184 = scmp.eq.s32.totalorder %s25, 1
      %p185 = por %p183, %p184
      %p187 = scmp.ne.s32.totalorder %s170, %s186
      %p188 = scmp.eq.s32.totalorder %s25, 0
      %p189 = por %p187, %p188
      %p190 = scmp.le.s32.totalorder 1, %s19
      %p191 = scmp.lt.s32.totalorder %s19, 3
      %p192 = pnand %p190, %p191
      %p193 = pneg %p192
      // Predicated region
      $region9: #{tpu_custom_call.1} parent=5 // pred_check
        _
      $region10: #{tpu_custom_call.1} parent=5 // pred_check_branch
        %195 = sbr.rel (%p192) target = $region12
      $region11: #{tpu_custom_call.1} parent=5 // pred_region
        %s196 = ssub.s32 %s19, 1
        // Predicated region
        $region13: #{tpu_custom_call.1} parent=11 // pred_check
          %p197 = pneg %p57
        $region14: #{tpu_custom_call.1} parent=11 // pred_check_branch
          %199 = sbr.rel (%p197) target = $region16
        $region15: #{tpu_custom_call.1} parent=11 // pred_region
          %s200 = smul.u32 4, %s28
          %202 = vsyncadd [#allocation4], 0
          %s203 = smul.addr %s200, 8
          %s204 = scalar_lea.hbm %s0, %s203
          %s205 = sshll.u32 %s204, 4
          %s206 = int_to_ptr.hbm [resolvable:$true] %s205
          %s207 = sshll.u32 [#allocation3], 4
          %s208 = int_to_ptr.vmem [resolvable:$true] %s207
          %213 = dma.hbm_to_vmem [thread:$0]  %s206, 512, %s208, [#allocation4], 128, 128, 8
        $region16: #{tpu_custom_call.1} parent=11 // pred_fallthru
          _
        // Predicated region
        $region17: #{tpu_custom_call.1} parent=11 // pred_check
          %p214 = pneg %p156
        $region18: #{tpu_custom_call.1} parent=11 // pred_check_branch
          %216 = sbr.rel (%p214) target = $region20
        $region19: #{tpu_custom_call.1} parent=11 // pred_region
          _
        $region20: #{tpu_custom_call.1} parent=11 // pred_fallthru
          _
      $region12: #{tpu_custom_call.1} parent=5 // pred_fallthru
        _
      %p217 = scmp.lt.s32.totalorder %s19, 2
      // Predicated region
      $region21: #{tpu_custom_call.1} parent=5 // pred_check
        %p218 = pneg %p217
      $region22: #{tpu_custom_call.1} parent=5 // pred_check_branch
        %220 = sbr.rel (%p218) target = $region24
      $region23: #{tpu_custom_call.1} parent=5 // pred_region
        // Predicated region
        $region25: #{tpu_custom_call.1} parent=23 // pred_check
          %p221 = pneg %p77
        $region26: #{tpu_custom_call.1} parent=23 // pred_check_branch
          %223 = sbr.rel (%p221) target = $region28
        $region27: #{tpu_custom_call.1} parent=23 // pred_region
          %s224 = sand.u32 %s19, 1
          %s225 = scalar_lea.sflag [#allocation7], %s224
          %s226 = sand.u32 %s67, 1
          %s227 = smul.addr %s226, 128
          %s228 = scalar_lea.vmem [#allocation6], %s227
          %230 = vsyncadd %s225, 0
          %s231 = smul.addr %s27, 8
          %s232 = scalar_lea.hbm %s1, %s231
          %s233 = sshll.u32 %s232, 4
          %s234 = int_to_ptr.hbm [resolvable:$true] %s233
          %s235 = sshll.u32 %s228, 4
          %s236 = int_to_ptr.vmem [resolvable:$true] %s235
          %241 = dma.hbm_to_vmem [thread:$0]  %s234, 2048, %s236, %s225, 256, 128, 8
        $region28: #{tpu_custom_call.1} parent=23 // pred_fallthru
          _
        // Predicated region
        $region29: #{tpu_custom_call.1} parent=23 // pred_check
          %p242 = pneg %p103
        $region30: #{tpu_custom_call.1} parent=23 // pred_check_branch
          %244 = sbr.rel (%p242) target = $region32
        $region31: #{tpu_custom_call.1} parent=23 // pred_region
          %s245 = sand.u32 %s19, 1
          %s246 = scalar_lea.sflag [#allocation7], %s245
          %s247 = sand.u32 %s93, 1
          %s248 = scalar_lea.vmem [#allocation8], %s247
          %250 = vsyncadd %s246, 0
          %s251 = scalar_lea.hbm %s2, %s27
          %s253 = sshll.u32 %s251, 4
          %s254 = int_to_ptr.hbm [resolvable:$true] %s253
          %s255 = sshll.u32 %s248, 4
          %s256 = int_to_ptr.vmem [resolvable:$true] %s255
          %258 = dma.hbm_to_vmem [thread:$0]  %s254, 16, %s256, %s246
        $region32: #{tpu_custom_call.1} parent=23 // pred_fallthru
          _
        // Predicated region
        $region33: #{tpu_custom_call.1} parent=23 // pred_check
          %p259 = pneg %p129
        $region34: #{tpu_custom_call.1} parent=23 // pred_check_branch
          %261 = sbr.rel (%p259) target = $region36
        $region35: #{tpu_custom_call.1} parent=23 // pred_region
          %s262 = sand.u32 %s119, 1
          %s263 = scalar_lea.sflag [#allocation10], %s262
          %s264 = sand.u32 %s119, 1
          %s265 = smul.addr %s264, 128
          %s266 = scalar_lea.vmem [#allocation9], %s265
          %s267 = smul.u32 16, %s27
          %269 = vsyncadd %s263, 0
          %s270 = smul.addr %s267, 8
          %s271 = scalar_lea.hbm %s3, %s270
          %s272 = sshll.u32 %s271, 4
          %s273 = int_to_ptr.hbm [resolvable:$true] %s272
          %s274 = sshll.u32 %s266, 4
          %s275 = int_to_ptr.vmem [resolvable:$true] %s274
          %280 = dma.hbm_to_vmem [thread:$0]  %s273, 2048, %s275, %s263, 128, 128, 8
        $region36: #{tpu_custom_call.1} parent=23 // pred_fallthru
          _
      $region24: #{tpu_custom_call.1} parent=5 // pred_fallthru
        _
      %p281 = scmp.le.s32.totalorder 1, %s19
      %p282 = scmp.lt.s32.totalorder %s19, 3
      %p283 = pnand %p281, %p282
      %p284 = pneg %p283
      // Predicated region
      $region37: #{tpu_custom_call.1} parent=5 // pred_check
        _
      $region38: #{tpu_custom_call.1} parent=5 // pred_check_branch
        %286 = sbr.rel (%p283) target = $region40
      $region39: #{tpu_custom_call.1} parent=5 // pred_region
        %s287 = ssub.s32 %s19, 1
        // Predicated region
        $region41: #{tpu_custom_call.1} parent=39 // pred_check
          %p288 = pneg %p57
        $region42: #{tpu_custom_call.1} parent=39 // pred_check_branch
          %290 = sbr.rel (%p288) target = $region44
        $region43: #{tpu_custom_call.1} parent=39 // pred_region
          %292 = dma.done [#allocation4], 512
        $region44: #{tpu_custom_call.1} parent=39 // pred_fallthru
          _
        %s293 = sand.u32 %s24, 1
        %s294 = scalar_lea.sflag [#allocation7], %s293
        %s295 = sand.u32 %s70, 1
        %s296 = smul.addr %s295, 128
        %s297 = scalar_lea.vmem [#allocation6], %s296
        // Predicated region
        $region45: #{tpu_custom_call.1} parent=39 // pred_check
          %p298 = pneg %p83
        $region46: #{tpu_custom_call.1} parent=39 // pred_check_branch
          %300 = sbr.rel (%p298) target = $region48
        $region47: #{tpu_custom_call.1} parent=39 // pred_region
          %302 = dma.done %s294, 2048
        $region48: #{tpu_custom_call.1} parent=39 // pred_fallthru
          _
        %s303 = sand.u32 %s24, 1
        %s304 = scalar_lea.sflag [#allocation7], %s303
        %s305 = sand.u32 %s96, 1
        %s306 = scalar_lea.vmem [#allocation8], %s305
        // Predicated region
        $region49: #{tpu_custom_call.1} parent=39 // pred_check
          %p307 = pneg %p109
        $region50: #{tpu_custom_call.1} parent=39 // pred_check_branch
          %309 = sbr.rel (%p307) target = $region52
        $region51: #{tpu_custom_call.1} parent=39 // pred_region
          %311 = dma.done %s304, 16
        $region52: #{tpu_custom_call.1} parent=39 // pred_fallthru
          _
        %s312 = sand.u32 %s122, 1
        %s313 = scalar_lea.sflag [#allocation10], %s312
        %s314 = sand.u32 %s122, 1
        %s315 = smul.addr %s314, 128
        %s316 = scalar_lea.vmem [#allocation9], %s315
        // Predicated region
        $region53: #{tpu_custom_call.1} parent=39 // pred_check
          %p317 = pneg %p135
        $region54: #{tpu_custom_call.1} parent=39 // pred_check_branch
          %319 = sbr.rel (%p317) target = $region56
        $region55: #{tpu_custom_call.1} parent=39 // pred_region
          %321 = dma.done %s313, 2048
        $region56: #{tpu_custom_call.1} parent=39 // pred_fallthru
          _
        %p322 = pneg %p57
        %p323 = pneg %p54
        %s324 = sand.u32 %s24, 1
        %s325 = scalar_lea.sflag [#allocation7], %s324
        %s326 = sand.u32 %s70, 1
        %s327 = smul.addr %s326, 128
        %s328 = scalar_lea.vmem [#allocation6], %s327
        %p329 = pneg %p83
        %p330 = pneg %p80
        %s331 = sand.u32 %s24, 1
        %s332 = scalar_lea.sflag [#allocation7], %s331
        %s333 = sand.u32 %s96, 1
        %s334 = scalar_lea.vmem [#allocation8], %s333
        %p335 = pneg %p109
        %p336 = pneg %p106
        %s337 = sand.u32 %s122, 1
        %s338 = scalar_lea.sflag [#allocation10], %s337
        %s339 = sand.u32 %s122, 1
        %s340 = smul.addr %s339, 128
        %s341 = scalar_lea.vmem [#allocation9], %s340
        %p342 = pneg %p135
        %p343 = pneg %p132
        %p344 = pneg %p156
        %p345 = pneg %p153
        %p346 = pneg %p182
        %p347 = pneg %p179
        %s348 = smul.u32 4, %s28
        %s349 = smul.u32 16, %s29
        %s350 = smul.u32 4, %s28
        %p351 = scmp.eq.s32.totalorder %s29, 0
        // Predicated region
        $region57: #{tpu_custom_call.1} parent=39 // pred_check
          %p352 = pneg %p351
        $region58: #{tpu_custom_call.1} parent=39 // pred_check_branch
          %354 = sbr.rel (%p352) target = $region60
        $region59: #{tpu_custom_call.1} parent=39 // pred_region
          %v355 = vld [vmem:[%s4] sm:$0x1]
          %v357 = vperm.slane %v355, 0
          %359 = vst [vmem:[#allocation2] sm:$0xff] %v357
          %360 = vst [vmem:[#allocation2 + $0x8] sm:$0xff] %v357
          %361 = vst [vmem:[#allocation2 + $0x10] sm:$0xff] %v357
          %362 = vst [vmem:[#allocation2 + $0x18] sm:$0xff] %v357
        $region60: #{tpu_custom_call.1} parent=39 // pred_fallthru
          _
        %v363 = vld [vmem:[#allocation3] sm:$0xff]
        %v364 = vld [vmem:[#allocation3 + $0x8] sm:$0xff]
        %v365 = vld [vmem:[#allocation3 + $0x10] sm:$0xff]
        %v366 = vld [vmem:[#allocation3 + $0x18] sm:$0xff]
        %v367 = vld [vmem:[%s297] sm:$0xff]
        %v368 = vld [vmem:[%s297 + $0x8] sm:$0xff]
        %v369 = vld [vmem:[%s297 + $0x10] sm:$0xff]
        %v370 = vld [vmem:[%s297 + $0x18] sm:$0xff]
        %v371 = vld [vmem:[%s297 + $0x20] sm:$0xff]
        %v372 = vld [vmem:[%s297 + $0x28] sm:$0xff]
        %v373 = vld [vmem:[%s297 + $0x30] sm:$0xff]
        %v374 = vld [vmem:[%s297 + $0x38] sm:$0xff]
        %v375 = vld [vmem:[%s297 + $0x40] sm:$0xff]
        %v376 = vld [vmem:[%s297 + $0x48] sm:$0xff]
        %v377 = vld [vmem:[%s297 + $0x50] sm:$0xff]
        %v378 = vld [vmem:[%s297 + $0x58] sm:$0xff]
        %v379 = vld [vmem:[%s297 + $0x60] sm:$0xff]
        %v380 = vld [vmem:[%s297 + $0x68] sm:$0xff]
        %v381 = vld [vmem:[%s297 + $0x70] sm:$0xff]
        %v382 = vld [vmem:[%s297 + $0x78] sm:$0xff]
        %v383 = vld [vmem:[%s306] sm:$0x1]
        %v385 = vperm.slane %v383, 0
        %387 = vmatpush.msra.mxu0 %v382
        %388 = vmatpush.msra.mxu0 %v381
        %389 = vmatpush.msra.mxu0 %v380
        %390 = vmatpush.msra.mxu0 %v379
        %391 = vmatpush.msra.mxu0 %v378
        %392 = vmatpush.msra.mxu0 %v377
        %393 = vmatpush.msra.mxu0 %v376
        %394 = vmatpush.msra.mxu0 %v375
        %395 = vmatpush.msra.mxu0 %v374
        %396 = vmatpush.msra.mxu0 %v373
        %397 = vmatpush.msra.mxu0 %v372
        %398 = vmatpush.msra.mxu0 %v371
        %399 = vmatpush.msra.mxu0 %v370
        %400 = vmatpush.msra.mxu0 %v369
        %401 = vmatpush.msra.mxu0 %v368
        %402 = vmatpush.msra.mxu0 %v367
        %403 = vmatmul.f32.gmra.mxu0 %v363
        %v404 = vpop.f32.mrf.mxu0
        %v405 = vadd.f32 %v385, %v404
        %406 = vmatmul.f32.gmra.mxu0 %v364
        %v407 = vpop.f32.mrf.mxu0
        %v408 = vadd.f32 %v385, %v407
        %409 = vmatmul.f32.gmra.mxu0 %v365
        %v410 = vpop.f32.mrf.mxu0
        %v411 = vadd.f32 %v385, %v410
        %412 = vmatmul.f32.gmra.mxu0 %v366
        %v413 = vpop.f32.mrf.mxu0
        %v414 = vadd.f32 %v385, %v413
        %415 = vdwg.mxu0
        %v416 = vmax.f32 %v405, 0.0
        %v417 = vmax.f32 %v408, 0.0
        %v418 = vmax.f32 %v411, 0.0
        %v419 = vmax.f32 %v414, 0.0
        %v420 = vld [vmem:[#allocation2] sm:$0xff]
        %v421 = vld [vmem:[#allocation2 + $0x8] sm:$0xff]
        %v422 = vld [vmem:[#allocation2 + $0x10] sm:$0xff]
        %v423 = vld [vmem:[#allocation2 + $0x18] sm:$0xff]
        %v424 = vld [vmem:[%s316] sm:$0xff]
        %v425 = vld [vmem:[%s316 + $0x8] sm:$0xff]
        %v426 = vld [vmem:[%s316 + $0x10] sm:$0xff]
        %v427 = vld [vmem:[%s316 + $0x18] sm:$0xff]
        %v428 = vld [vmem:[%s316 + $0x20] sm:$0xff]
        %v429 = vld [vmem:[%s316 + $0x28] sm:$0xff]
        %v430 = vld [vmem:[%s316 + $0x30] sm:$0xff]
        %v431 = vld [vmem:[%s316 + $0x38] sm:$0xff]
        %v432 = vld [vmem:[%s316 + $0x40] sm:$0xff]
        %v433 = vld [vmem:[%s316 + $0x48] sm:$0xff]
        %v434 = vld [vmem:[%s316 + $0x50] sm:$0xff]
        %v435 = vld [vmem:[%s316 + $0x58] sm:$0xff]
        %v436 = vld [vmem:[%s316 + $0x60] sm:$0xff]
        %v437 = vld [vmem:[%s316 + $0x68] sm:$0xff]
        %v438 = vld [vmem:[%s316 + $0x70] sm:$0xff]
        %v439 = vld [vmem:[%s316 + $0x78] sm:$0xff]
        %440 = vmatpush.msra.mxu0 %v439
        %441 = vmatpush.msra.mxu0 %v438
        %442 = vmatpush.msra.mxu0 %v437
        %443 = vmatpush.msra.mxu0 %v436
        %444 = vmatpush.msra.mxu0 %v435
        %445 = vmatpush.msra.mxu0 %v434
        %446 = vmatpush.msra.mxu0 %v433
        %447 = vmatpush.msra.mxu0 %v432
        %448 = vmatpush.msra.mxu0 %v431
        %449 = vmatpush.msra.mxu0 %v430
        %450 = vmatpush.msra.mxu0 %v429
        %451 = vmatpush.msra.mxu0 %v428
        %452 = vmatpush.msra.mxu0 %v427
        %453 = vmatpush.msra.mxu0 %v426
        %454 = vmatpush.msra.mxu0 %v425
        %455 = vmatpush.msra.mxu0 %v424
        %456 = vmatmul.f32.gmra.mxu0 %v416
        %v457 = vpop.f32.mrf.mxu0
        %v458 = vadd.f32 0.0, %v457
        %459 = vmatmul.f32.gmra.mxu0 %v417
        %v460 = vpop.f32.mrf.mxu0
        %v461 = vadd.f32 0.0, %v460
        %462 = vmatmul.f32.gmra.mxu0 %v418
        %v463 = vpop.f32.mrf.mxu0
        %v464 = vadd.f32 0.0, %v463
        %465 = vmatmul.f32.gmra.mxu0 %v419
        %v466 = vpop.f32.mrf.mxu0
        %v467 = vadd.f32 0.0, %v466
        %468 = vdwg.mxu0
        %v469 = vadd.f32 %v420, %v458
        %v470 = vadd.f32 %v421, %v461
        %v471 = vadd.f32 %v422, %v464
        %v472 = vadd.f32 %v423, %v467
        %473 = vst [vmem:[#allocation2] sm:$0xff] %v469
        %474 = vst [vmem:[#allocation2 + $0x8] sm:$0xff] %v470
        %475 = vst [vmem:[#allocation2 + $0x10] sm:$0xff] %v471
        %476 = vst [vmem:[#allocation2 + $0x18] sm:$0xff] %v472
        %p477 = scmp.eq.s32.totalorder %s29, 1
        // Predicated region
        $region61: #{tpu_custom_call.1} parent=39 // pred_check
          %p478 = pneg %p477
        $region62: #{tpu_custom_call.1} parent=39 // pred_check_branch
          %480 = sbr.rel (%p478) target = $region64
        $region63: #{tpu_custom_call.1} parent=39 // pred_region
          %v481 = vld [vmem:[#allocation2] sm:$0xff]
          %v482 = vld [vmem:[#allocation2 + $0x8] sm:$0xff]
          %v483 = vld [vmem:[#allocation2 + $0x10] sm:$0xff]
          %v484 = vld [vmem:[#allocation2 + $0x18] sm:$0xff]
          %485 = vst [vmem:[#allocation11] sm:$0xff] %v481
          %486 = vst [vmem:[#allocation11 + $0x8] sm:$0xff] %v482
          %487 = vst [vmem:[#allocation11 + $0x10] sm:$0xff] %v483
          %488 = vst [vmem:[#allocation11 + $0x18] sm:$0xff] %v484
        $region64: #{tpu_custom_call.1} parent=39 // pred_fallthru
          _
        // Predicated region
        $region65: #{tpu_custom_call.1} parent=39 // pred_check
          %p489 = pneg %p179
        $region66: #{tpu_custom_call.1} parent=39 // pred_check_branch
          %491 = sbr.rel (%p489) target = $region68
        $region67: #{tpu_custom_call.1} parent=39 // pred_region
          %s492 = smul.u32 4, %s28
          %494 = vsyncadd [#allocation5], 0
          %s495 = smul.addr %s492, 8
          %s496 = scalar_lea.hbm %s5, %s495
          %s497 = sshll.u32 [#allocation11], 4
          %s498 = int_to_ptr.vmem [resolvable:$true] %s497
          %s499 = sshll.u32 %s496, 4
          %s500 = int_to_ptr.hbm [resolvable:$true] %s499
          %505 = dma.vmem_to_hbm [thread:$0]  %s498, 512, %s500, [#allocation5], 128, 128, 8
        $region68: #{tpu_custom_call.1} parent=39 // pred_fallthru
          _
        // Predicated region
        $region69: #{tpu_custom_call.1} parent=39 // pred_check
          %p506 = pneg %p179
        $region70: #{tpu_custom_call.1} parent=39 // pred_check_branch
          %508 = sbr.rel (%p506) target = $region72
        $region71: #{tpu_custom_call.1} parent=39 // pred_region
          %510 = dma.done [#allocation5], 512
        $region72: #{tpu_custom_call.1} parent=39 // pred_fallthru
          _
      $region40: #{tpu_custom_call.1} parent=5 // pred_fallthru
        _
      %p511 = scmp.le.s32.totalorder 2, %s19
      // Predicated region
      $region73: #{tpu_custom_call.1} parent=5 // pred_check
        %p512 = pneg %p511
      $region74: #{tpu_custom_call.1} parent=5 // pred_check_branch
        %514 = sbr.rel (%p512) target = $region76
      $region75: #{tpu_custom_call.1} parent=5 // pred_region
        %s515 = ssub.s32 %s19, 2
      $region76: #{tpu_custom_call.1} parent=5 // pred_fallthru
        _
    $region6: #{tpu_custom_call.1} parent=1 // loop_footer
      %s23 = sadd.s32 1, %s19
    $region7: #{tpu_custom_call.1} parent=1 // loop_footer_branch
      %18 = sbr.rel target = $region3
    $region8: #{tpu_custom_call.1} parent=1 // loop_exit
      _
    %516 = vsyncpa [#allocation4], 1
    %s517 = scalar_lea.sflag [#allocation4], 1
    %518 = vsyncpa %s517, 1
    %519 = vsyncpa [#allocation7], 1
    %s520 = scalar_lea.sflag [#allocation7], 1
    %521 = vsyncpa %s520, 1
    %522 = vsyncpa [#allocation10], 1
    %s523 = scalar_lea.sflag [#allocation10], 1
    %524 = vsyncpa %s523, 1
    %525 = vsyncpa [#allocation5], 1
    %s526 = scalar_lea.sflag [#allocation5], 1
    %527 = vsyncpa %s526, 1

</llo_original>
